<compile_context>
chip_gen: v6e
topology: v6e:2x2x1
jax: 0.10.0
libtpu: 0.0.40
codegen_flags: <defaults>
</compile_context>

<pallas_src>
import math
import jax
import jax.numpy as jnp
from jax.experimental import pallas as pl
from jax.experimental.pallas import tpu as pltpu

_VMEM_LIMIT = 32 * 1024 * 1024  # safe scoped-VMEM budget on v5e/v6e/v7x


def _round_up(x, m):
    return ((x + m - 1) // m) * m


def _pick_seq_tile(s, t_max):
    """Largest tile <= t_max that divides s and satisfies the sublane rule."""
    if s <= t_max:
        return s
    for t in range(t_max, 7, -1):
        if s % t == 0 and t % 8 == 0:
            return t
    return s  # fallback: whole sequence in one block


# ----------------------------------------------------------------------------
# Tiled (grouped) linear:  out[g] = x[g] @ w[g] + b[g]
# ----------------------------------------------------------------------------
def _matmul_kernel_acc(x_ref, w_ref, b_ref, o_ref, acc_ref):
    """K-pipelined matmul with f32 VMEM accumulator (nk > 1)."""
    @pl.when(pl.program_id(3) == 0)
    def _():
        acc_ref[...] = jnp.zeros_like(acc_ref)

    acc_ref[...] += jnp.dot(x_ref[0], w_ref[0], preferred_element_type=jnp.float32)

    @pl.when(pl.program_id(3) == pl.num_programs(3) - 1)
    def _():
        o_ref[0] = (acc_ref[...] + b_ref[0].astype(jnp.float32)).astype(o_ref.dtype)


def _matmul_kernel_single_k(x_ref, w_ref, b_ref, o_ref):
    """Single-K-tile matmul: no scratch, no init/finalize branches."""
    o_ref[0] = (jnp.dot(x_ref[0], w_ref[0], preferred_element_type=jnp.float32)
                + b_ref[0].astype(jnp.float32)).astype(o_ref.dtype)


def grouped_linear(x, w, b=None, *, out_dtype=None, compute_dtype=None,
                   tm=256, tn=256, tk=512):
    """x: (G, M, K), w: (G, K, N), b: (G, N) -> (G, M, N). Tiled + pipelined."""
    G, M, K = x.shape
    G2, K2, N = w.shape
    assert G == G2 and K == K2
    out_dtype = out_dtype or x.dtype
    if b is None:
        b = jnp.zeros((G, N), jnp.float32)
    if compute_dtype is not None:
        x = x.astype(compute_dtype)
        w = w.astype(compute_dtype)

    # Tile sizes honoring the (8, 128) layout rule, bounded by padded shapes.
    tm = min(tm, _round_up(M, 8))
    tn = min(tn, _round_up(N, 128))
    tk = min(tk, _round_up(K, 128))
    Mp, Np, Kp = _round_up(M, tm), _round_up(N, tn), _round_up(K, tk)
    if (Mp, Kp) != (M, K):
        x = jnp.pad(x, ((0, 0), (0, Mp - M), (0, Kp - K)))
    if (Kp, Np) != (K, N):
        w = jnp.pad(w, ((0, 0), (0, Kp - K), (0, Np - N)))
    if Np != N:
        b = jnp.pad(b, ((0, 0), (0, Np - N)))
    b = b.reshape(G, 1, Np)

    nk = Kp // tk
    if nk == 1:
        out = pl.pallas_call(
            _matmul_kernel_single_k,
            out_shape=jax.ShapeDtypeStruct((G, Mp, Np), out_dtype),
            grid=(G, Mp // tm, Np // tn),
            in_specs=[
                pl.BlockSpec((1, tm, Kp), lambda g, i, j: (g, i, 0)),
                pl.BlockSpec((1, Kp, tn), lambda g, i, j: (g, 0, j)),
                pl.BlockSpec((1, 1, tn), lambda g, i, j: (g, 0, j)),
            ],
            out_specs=pl.BlockSpec((1, tm, tn), lambda g, i, j: (g, i, j)),
            compiler_params=pltpu.CompilerParams(
                dimension_semantics=("parallel", "parallel", "parallel"),
                vmem_limit_bytes=_VMEM_LIMIT),
        )(x, w, b)
    else:
        out = pl.pallas_call(
            _matmul_kernel_acc,
            out_shape=jax.ShapeDtypeStruct((G, Mp, Np), out_dtype),
            grid=(G, Mp // tm, Np // tn, nk),
            in_specs=[
                pl.BlockSpec((1, tm, tk), lambda g, i, j, k: (g, i, k)),
                pl.BlockSpec((1, tk, tn), lambda g, i, j, k: (g, k, j)),
                pl.BlockSpec((1, 1, tn), lambda g, i, j, k: (g, 0, j)),
            ],
            out_specs=pl.BlockSpec((1, tm, tn), lambda g, i, j, k: (g, i, j)),
            scratch_shapes=[pltpu.VMEM((tm, tn), jnp.float32)],
            compiler_params=pltpu.CompilerParams(
                dimension_semantics=("parallel", "parallel", "parallel", "arbitrary"),
                vmem_limit_bytes=_VMEM_LIMIT),
        )(x, w, b)
    if (Mp, Np) != (M, N):
        out = out[:, :M, :N]
    return out


def linear(x, w, b=None, **kw):
    """x: (M, K) @ w: (K, N) + b via the tiled grouped kernel (G=1)."""
    y = grouped_linear(x[None], w[None], None if b is None else b[None], **kw)
    return y[0]


# ----------------------------------------------------------------------------
# Fused conditioning MLP: Linear(cond_len, 512) + ReLU + Linear(512, d_model)
# ----------------------------------------------------------------------------
def _cond_mlp_kernel(c_ref, w1_ref, b1_ref, w2_ref, o_ref):
    hdn = jnp.dot(c_ref[...], w1_ref[...], preferred_element_type=jnp.float32)
    hdn = jnp.maximum(hdn + b1_ref[...], 0.0)
    o_ref[...] = jnp.dot(hdn.astype(w2_ref.dtype), w2_ref[...],
                         preferred_element_type=jnp.float32).astype(o_ref.dtype)


def cond_mlp(c, w1, b1, w2):
    """Tiny MLP fused in one kernel — the 512-wide intermediate stays in VMEM."""
    B = c.shape[0]
    N1, N2 = w1.shape[1], w2.shape[1]
    return pl.pallas_call(
        _cond_mlp_kernel,
        out_shape=jax.ShapeDtypeStruct((B, N2), c.dtype),
        grid=(1,),
        in_specs=[
            pl.BlockSpec(c.shape, lambda i: (0, 0)),
            pl.BlockSpec(w1.shape, lambda i: (0, 0)),
            pl.BlockSpec((1, N1), lambda i: (0, 0)),
            pl.BlockSpec(w2.shape, lambda i: (0, 0)),
        ],
        out_specs=pl.BlockSpec((B, N2), lambda i: (0, 0)),
        compiler_params=pltpu.CompilerParams(vmem_limit_bytes=_VMEM_LIMIT),
    )(c, w1, b1.reshape(1, N1), w2)


# ----------------------------------------------------------------------------
# Packed attention.
#   q/k/v: (B, S, h*d_k) lane-dense; output (B, S, h*d_k) (== the reference's
#   transpose(1,2).view(B, S, h*d_k)).
#   - single-KV-block fast path: direct softmax, no scratch,
#   - multi-KV-block path: flash-style online softmax over KV tiles.
# ----------------------------------------------------------------------------
def _split_heads(x, h, d_k):
    t = x.shape[0]
    return jnp.transpose(x.reshape(t, h, d_k), (1, 0, 2))      # (h, t, d_k)


def _make_single_block_attention_kernel(h, d_k, has_cond, emit_probs, compute_dtype):
    def kernel(*refs):
        refs = list(refs)
        q_ref = refs.pop(0)
        k_ref = refs.pop(0)
        v_ref = refs.pop(0)
        c_ref = refs.pop(0) if has_cond else None
        o_ref = refs.pop(0)
        p_ref = refs.pop(0) if emit_probs else None

        tq = q_ref.shape[1]
        q = q_ref[0]                                    # (tq, D) lane-dense load
        k = k_ref[0]
        v = v_ref[0]
        if has_cond:
            v = v + c_ref[0]                            # (tkv, D) + (1, D) in-kernel

        q = _split_heads(q, h, d_k)
        k = _split_heads(k, h, d_k)
        v = _split_heads(v, h, d_k)
        if compute_dtype is not None:
            q = q.astype(compute_dtype)
            k = k.astype(compute_dtype)
            v = v.astype(compute_dtype)

        # 1/sqrt(d_k) is folded into the Q-projection weights.
        s = jnp.einsum('hqd,hkd->hqk', q, k, preferred_element_type=jnp.float32)
        m = jnp.max(s, axis=-1, keepdims=True)
        p = jnp.exp(s - m)
        inv_l = pl.reciprocal(jnp.sum(p, axis=-1, keepdims=True), approx=True)
        out = jnp.einsum('hqk,hkd->hqd', p.astype(v.dtype), v,
                         preferred_element_type=jnp.float32) * inv_l
        out = jnp.transpose(out, (1, 0, 2)).reshape(tq, h * d_k)
        o_ref[0] = out.astype(o_ref.dtype)              # lane-dense store
        if emit_probs:
            p_ref[0] = (p * inv_l).astype(p_ref.dtype)
    return kernel


def _make_flash_attention_kernel(h, d_k, has_cond, compute_dtype):
    def kernel(*refs):
        refs = list(refs)
        q_ref = refs.pop(0)
        k_ref = refs.pop(0)
        v_ref = refs.pop(0)
        c_ref = refs.pop(0) if has_cond else None
        o_ref = refs.pop(0)
        m_sc, l_sc, acc_sc = refs

        ki = pl.program_id(2)

        @pl.when(ki == 0)
        def _():
            m_sc[...] = jnp.full_like(m_sc, -jnp.inf)
            l_sc[...] = jnp.zeros_like(l_sc)
            acc_sc[...] = jnp.zeros_like(acc_sc)

        tq = q_ref.shape[1]
        q = q_ref[0]
        k = k_ref[0]
        v = v_ref[0]
        if has_cond:
            v = v + c_ref[0]

        q = _split_heads(q, h, d_k)
        k = _split_heads(k, h, d_k)
        v = _split_heads(v, h, d_k)
        if compute_dtype is not None:
            q = q.astype(compute_dtype)
            k = k.astype(compute_dtype)
            v = v.astype(compute_dtype)

        # Contract on the last dim of both operands (no k.T / XLU transpose).
        s = jnp.einsum('hqd,hkd->hqk', q, k, preferred_element_type=jnp.float32)

        m_prev = m_sc[...]
        m_new = jnp.maximum(m_prev, jnp.max(s, axis=-1, keepdims=True))
        alpha = jnp.exp(m_prev - m_new)
        p = jnp.exp(s - m_new)
        l_sc[...] = alpha * l_sc[...] + jnp.sum(p, axis=-1, keepdims=True)
        acc_sc[...] = alpha * acc_sc[...] + jnp.einsum(
            'hqk,hkd->hqd', p.astype(v.dtype), v,
            preferred_element_type=jnp.float32)
        m_sc[...] = m_new

        @pl.when(ki == pl.num_programs(2) - 1)
        def _():
            inv_l = pl.reciprocal(l_sc[...], approx=True)   # EUP, not VALU
            out = acc_sc[...] * inv_l                       # (h, tq, d_k)
            out = jnp.transpose(out, (1, 0, 2)).reshape(tq, h * d_k)
            o_ref[0] = out.astype(o_ref.dtype)              # lane-dense store
    return kernel


def packed_attention(q, k, v, c=None, *, h, store_attn=False, compute_dtype=None,
                     tq_max=256, tkv_max=256):
    B, Sq, D = q.shape
    Skv = k.shape[1]
    d_k = D // h
    tq = _pick_seq_tile(Sq, tq_max)
    tkv = Skv if store_attn else _pick_seq_tile(Skv, tkv_max)
    nq, nkv = Sq // tq, Skv // tkv
    has_cond = c is not None
    single = (nkv == 1)

    in_specs = [
        pl.BlockSpec((1, tq, D), lambda b, qi, ki: (b, qi, 0)),
        pl.BlockSpec((1, tkv, D), lambda b, qi, ki: (b, ki, 0)),
        pl.BlockSpec((1, tkv, D), lambda b, qi, ki: (b, ki, 0)),
    ]
    inputs = [q, k, v]
    if has_cond:
        in_specs.append(pl.BlockSpec((1, 1, D), lambda b, qi, ki: (b, 0, 0)))
        inputs.append(c[:, None, :])

    o_spec = pl.BlockSpec((1, tq, D), lambda b, qi, ki: (b, qi, 0))
    o_shape = jax.ShapeDtypeStruct((B, Sq, D), q.dtype)
    if store_attn:
        assert single, "store_attn requires the KV sequence to fit one block"
        out_shape = (o_shape, jax.ShapeDtypeStruct((B, h, Sq, Skv), q.dtype))
        out_specs = (o_spec,
                     pl.BlockSpec((1, h, tq, Skv), lambda b, qi, ki: (b, 0, qi, 0)))
    else:
        out_shape = o_shape
        out_specs = o_spec

    if single:
        kernel = _make_single_block_attention_kernel(
            h, d_k, has_cond, store_attn, compute_dtype)
        scratch = []
        semantics = ("parallel", "parallel", "parallel")
    else:
        kernel = _make_flash_attention_kernel(h, d_k, has_cond, compute_dtype)
        scratch = [pltpu.VMEM((h, tq, 1), jnp.float32),
                   pltpu.VMEM((h, tq, 1), jnp.float32),
                   pltpu.VMEM((h, tq, d_k), jnp.float32)]
        semantics = ("parallel", "parallel", "arbitrary")

    result = pl.pallas_call(
        kernel,
        out_shape=out_shape,
        grid=(B, nq, nkv),
        in_specs=in_specs,
        out_specs=out_specs,
        scratch_shapes=scratch,
        compiler_params=pltpu.CompilerParams(
            dimension_semantics=semantics,
            vmem_limit_bytes=_VMEM_LIMIT),
    )(*inputs)
    if store_attn:
        return result[0], result[1]
    return result, None


# ----------------------------------------------------------------------------
# Module wrapper (parameter setup + cheap reshape glue in plain JAX)
# ----------------------------------------------------------------------------
class MultiHeadedAttentionPallas:
    def __init__(self, h, d_model, in_size, cond_len, key, dropout=0.1,
                 compute_dtype=None):
        assert d_model % h == 0
        self.h = h
        self.d_k = d_model // h
        self.d_model = d_model
        self.in_size = in_size
        self.cond_len = cond_len
        self.compute_dtype = compute_dtype  # e.g. jnp.bfloat16 on v6e/v7x
        self.attn = None
        # TODO(synk): training-mode dropout on the attention probabilities is
        # omitted (eval-mode identity), matching model.eval() semantics.
        keys = jax.random.split(key, 12)

        def linear_init(kw, kb, fan_in, fan_out, bias=True):
            bound = 1.0 / math.sqrt(fan_in)  # torch.nn.Linear default init
            w = jax.random.uniform(kw, (fan_in, fan_out), jnp.float32, -bound, bound)
            b = (jax.random.uniform(kb, (fan_out,), jnp.float32, -bound, bound)
                 if bias else None)
            return w, b

        (w_q, b_q), (w_k, b_k), (w_v, b_v), (self.w_o, self.b_o) = [
            linear_init(keys[2 * i], keys[2 * i + 1], d_model, d_model)
            for i in range(4)]

        # Fold the 1/sqrt(d_k) attention scale into the Q projection (free).
        s = 1.0 / math.sqrt(self.d_k)
        w_q, b_q = w_q * s, b_q * s
        # Grouped form (distinct q/k/v inputs): one pallas_call with a G=3 axis.
        self.w_qkv_g = jnp.stack([w_q, w_k, w_v])                 # (3, D, D)
        self.b_qkv_g = jnp.stack([b_q, b_k, b_v])                 # (3, D)
        # Concatenated form (self-attention): x streamed from HBM once.
        self.w_qkv_c = jnp.concatenate([w_q, w_k, w_v], axis=1)   # (D, 3D)
        self.b_qkv_c = jnp.concatenate([b_q, b_k, b_v])           # (3D,)

        # cond_mlp: Linear(cond_len, 512) + ReLU + Linear(512, d_model, no bias)
        self.cond_w1, self.cond_b1 = linear_init(keys[8], keys[9], cond_len, 512)
        self.cond_w2, _ = linear_init(keys[10], keys[11], 512, d_model, bias=False)

    def __call__(self, query, key, value, cond=None, store_attn=False):
        B, Sq, _ = query.shape
        Skv = key.shape[1]
        D = self.d_model
        cd = self.compute_dtype

        if query is key and key is value:
            # Self-attention: fused QKV matmul with concatenated weights.
            y = linear(query.reshape(B * Sq, D), self.w_qkv_c, self.b_qkv_c,
                       compute_dtype=cd)
            q_p = y[:, :D].reshape(B, Sq, D)
            k_p = y[:, D:2 * D].reshape(B, Sq, D)
            v_p = y[:, 2 * D:].reshape(B, Sq, D)
        elif query.shape == key.shape == value.shape:
            # Distinct inputs: one pallas_call with a batched (G=3) weight axis.
            x = jnp.stack([query, key, value]).reshape(3, B * Sq, D)
            y = grouped_linear(x, self.w_qkv_g, self.b_qkv_g, compute_dtype=cd)
            q_p, k_p, v_p = (y[i].reshape(B, Sq, D) for i in range(3))
        else:
            q_p = linear(query.reshape(B * Sq, D), self.w_qkv_g[0],
                         self.b_qkv_g[0], compute_dtype=cd).reshape(B, Sq, D)
            k_p = linear(key.reshape(B * Skv, D), self.w_qkv_g[1],
                         self.b_qkv_g[1], compute_dtype=cd).reshape(B, Skv, D)
            v_p = linear(value.reshape(B * Skv, D), self.w_qkv_g[2],
                         self.b_qkv_g[2], compute_dtype=cd).reshape(B, Skv, D)

        c = None
        if cond is not None:
            # PyTorch adds cond (B, d_model) to value (B, h, in_size, d_k);
            # shape-valid only when d_model == d_k (h == 1) and in_size == S_kv.
            assert self.d_model == self.d_k and self.in_size == Skv, \
                "cond path requires d_model == d_k and in_size == kv seq len"
            c = cond_mlp(cond, self.cond_w1, self.cond_b1, self.cond_w2)  # (B, D)

        x, attn = packed_attention(q_p, k_p, v_p, c, h=self.h,
                                   store_attn=store_attn, compute_dtype=cd)
        self.attn = attn  # (B, h, Sq, Skv) only when store_attn=True, else None

        out = linear(x.reshape(B * Sq, D), self.w_o, self.b_o, compute_dtype=cd)
        return out.reshape(B, Sq, D)


# ----------------------------------------------------------------------------
# Pure-JAX reference of the PyTorch forward (eval mode) for sanity checks.
# ----------------------------------------------------------------------------
def _reference_forward(m, query, key, value, cond=None):
    B, Sq, D = query.shape
    h, d_k = m.h, m.d_k
    q = (query @ m.w_qkv_g[0] + m.b_qkv_g[0]).reshape(B, Sq, h, d_k).transpose(0, 2, 1, 3)
    k = (key @ m.w_qkv_g[1] + m.b_qkv_g[1]).reshape(B, -1, h, d_k).transpose(0, 2, 1, 3)
    v = (value @ m.w_qkv_g[2] + m.b_qkv_g[2]).reshape(B, -1, h, d_k).transpose(0, 2, 1, 3)
    if cond is not None:
        c = jnp.maximum(cond @ m.cond_w1 + m.cond_b1, 0.0) @ m.cond_w2
        v = v + c[:, None, None, :]
    scores = jnp.einsum('bhqd,bhkd->bhqk', q, k)   # 1/sqrt(d_k) already in q
    p = jax.nn.softmax(scores, axis=-1)
    x = jnp.einsum('bhqk,bhkd->bhqd', p, v)
    x = x.transpose(0, 2, 1, 3).reshape(B, Sq, h * d_k)
    return x @ m.w_o + m.b_o, p


# ----------------------------------------------------------------------------
if __name__ == "__main__":
    root = jax.random.PRNGKey(0)
    kp1, kp2, kq, kk, kv, kc = jax.random.split(root, 6)

    # Case 1: multi-head attention, no conditioning.
    B, S, d_model, h, cond_len = 2, 8, 32, 4, 6
    mha = MultiHeadedAttentionPallas(h, d_model, in_size=S, cond_len=cond_len, key=kp1)
    q = jax.random.normal(kq, (B, S, d_model), jnp.float32)
    k = jax.random.normal(kk, (B, S, d_model), jnp.float32)
    v = jax.random.normal(kv, (B, S, d_model), jnp.float32)

    out1 = mha(q, k, v)                               # single-KV-block fast path
    out1_ref, p_full_ref = _reference_forward(mha, q, k, v)
    assert jnp.allclose(out1, out1_ref, rtol=2e-2, atol=2e-2)

    out1b = mha(q, k, v, store_attn=True)             # explicit attention-probs path
    assert mha.attn.shape == (B, h, S, S)
    assert jnp.allclose(out1b, out1_ref, rtol=2e-2, atol=2e-2)
    assert jnp.allclose(mha.attn, p_full_ref, rtol=2e-2, atol=2e-2)

    out_sa = mha(q, q, q)                             # self-attention -> fused QKV weights
    out_sa_ref, _ = _reference_forward(mha, q, q, q)
    assert jnp.allclose(out_sa, out_sa_ref, rtol=2e-2, atol=2e-2)

    # Case 2: conditioning path (shape-valid only when h == 1 and in_size == S).
    mha1 = MultiHeadedAttentionPallas(1, 8, in_size=S, cond_len=cond_len, key=kp2)
    q1 = jax.random.normal(kq, (B, S, 8), jnp.float32)
    k1 = jax.random.normal(kk, (B, S, 8), jnp.float32)
    v1 = jax.random.normal(kv, (B, S, 8), jnp.float32)
    cond = jax.random.normal(kc, (B, cond_len), jnp.float32)
    out2 = mha1(q1, k1, v1, cond=cond)
    out2_ref, _ = _reference_forward(mha1, q1, k1, v1, cond=cond)
    assert jnp.allclose(out2, out2_ref, rtol=2e-2, atol=2e-2)

    # Case 3: flash (multi-KV-block online-softmax) path coverage, small tiles.
    Bf, Sf, Df, hf = 2, 32, 32, 4
    d_kf = Df // hf
    qf = jax.random.normal(jax.random.PRNGKey(7), (Bf, Sf, Df), jnp.float32)
    kf = jax.random.normal(jax.random.PRNGKey(8), (Bf, Sf, Df), jnp.float32)
    vf = jax.random.normal(jax.random.PRNGKey(9), (Bf, Sf, Df), jnp.float32)
    of, _ = packed_attention(qf, kf, vf, h=hf, tq_max=16, tkv_max=16)  # nkv = 2
    qh = qf.reshape(Bf, Sf, hf, d_kf).transpose(0, 2, 1, 3)
    kh = kf.reshape(Bf, Sf, hf, d_kf).transpose(0, 2, 1, 3)
    vh = vf.reshape(Bf, Sf, hf, d_kf).transpose(0, 2, 1, 3)
    pf = jax.nn.softmax(jnp.einsum('bhqd,bhkd->bhqk', qh, kh), axis=-1)
    of_ref = (jnp.einsum('bhqk,bhkd->bhqd', pf, vh)
              .transpose(0, 2, 1, 3).reshape(Bf, Sf, Df))
    assert jnp.allclose(of, of_ref, rtol=2e-2, atol=2e-2)

    # bf16 MXU-feed fast path (v6e/v7x) — compile/run coverage.
    mha_bf16 = MultiHeadedAttentionPallas(h, d_model, in_size=S, cond_len=cond_len,
                                          key=kp1, compute_dtype=jnp.bfloat16)
    out3 = mha_bf16(q, k, v)

    jax.block_until_ready((out1, out1b, out_sa, out2, of, out3))
    assert out1.shape == (B, S, d_model) and out2.shape == (B, S, 8)
    assert out3.shape == (B, S, d_model)
    print("KERNEL_OK")
</pallas_src>

<mosaic_0001>
module attributes {stable_mosaic.version = 11 : i64} {
  func.func @_matmul_kernel_single_k(%arg0: i32, %arg1: i32, %arg2: i32, %arg3: memref<1x16x128xf32, #tpu.memory_space<vmem>>, %arg4: memref<1x128x128xf32, #tpu.memory_space<vmem>>, %arg5: memref<1x1x128xf32, #tpu.memory_space<vmem>>, %arg6: memref<1x16x128xf32, #tpu.memory_space<vmem>>) attributes {dimension_semantics = [#tpu.dimension_semantics<parallel>, #tpu.dimension_semantics<parallel>, #tpu.dimension_semantics<parallel>], iteration_bounds = array<i64: 3, 1, 1>, scalar_prefetch = 0 : i64, scratch_operands = 0 : i64, tpu.core_type = #tpu.core_type<tc>, window_params = [{transform_indices = @transform_0, window_bounds = array<i64: 1, 16, 128>}, {transform_indices = @transform_1, window_bounds = array<i64: 1, 128, 128>}, {transform_indices = @transform_2, window_bounds = array<i64: 1, 1, 128>}, {transform_indices = @transform_3, window_bounds = array<i64: 1, 16, 128>}]} {
    %c0 = arith.constant 0 : index
    %c0_0 = arith.constant 0 : index
    %c0_1 = arith.constant 0 : index
    %0 = vector.load %arg3[%c0, %c0_0, %c0_1] : memref<1x16x128xf32, #tpu.memory_space<vmem>>, vector<1x16x128xf32>
    %1 = vector.shape_cast %0 : vector<1x16x128xf32> to vector<16x128xf32>
    %c0_2 = arith.constant 0 : index
    %c0_3 = arith.constant 0 : index
    %c0_4 = arith.constant 0 : index
    %2 = vector.load %arg4[%c0_2, %c0_3, %c0_4] : memref<1x128x128xf32, #tpu.memory_space<vmem>>, vector<1x128x128xf32>
    %3 = vector.shape_cast %2 : vector<1x128x128xf32> to vector<128x128xf32>
    %cst = arith.constant dense<0.000000e+00> : vector<16x128xf32>
    %4 = tpu.matmul %1, %3, %cst {dimension_numbers = #tpu.dot_dimension_numbers<[1], [0], [0], [1], [0, 0, 1, 1], [], []>} : vector<16x128xf32>, vector<128x128xf32>, vector<16x128xf32> -> vector<16x128xf32>
    %c0_5 = arith.constant 0 : index
    %c0_6 = arith.constant 0 : index
    %c0_7 = arith.constant 0 : index
    %5 = vector.load %arg5[%c0_5, %c0_6, %c0_7] : memref<1x1x128xf32, #tpu.memory_space<vmem>>, vector<1x1x128xf32>
    %6 = vector.shape_cast %5 : vector<1x1x128xf32> to vector<1x128xf32>
    %7 = vector.broadcast %6 : vector<1x128xf32> to vector<16x128xf32>
    %8 = arith.addf %4, %7 : vector<16x128xf32>
    %c0_8 = arith.constant 0 : index
    %c0_9 = arith.constant 0 : index
    %c0_10 = arith.constant 0 : index
    %9 = vector.load %arg6[%c0_8, %c0_9, %c0_10] : memref<1x16x128xf32, #tpu.memory_space<vmem>>, vector<1x16x128xf32>
    %10 = vector.shape_cast %9 : vector<1x16x128xf32> to vector<16x128xf32>
    %11 = vector.shape_cast %8 : vector<16x128xf32> to vector<1x16x128xf32>
    tpu.vector_store %arg6[%c0_8, %c0_9, %c0_10], %11 {strides = array<i32>} : memref<1x16x128xf32, #tpu.memory_space<vmem>>, vector<1x16x128xf32>,
    return
  }
  func.func @transform_0(%arg0: i32, %arg1: i32, %arg2: i32) -> (i32, i32, i32) {
    %c0_i32 = arith.constant 0 : i32
    %c0_i32_0 = arith.constant 0 : i32
    return %arg0, %arg1, %c0_i32 : i32, i32, i32
  }
  func.func @transform_1(%arg0: i32, %arg1: i32, %arg2: i32) -> (i32, i32, i32) {
    %c0_i32 = arith.constant 0 : i32
    %c0_i32_0 = arith.constant 0 : i32
    return %arg0, %c0_i32, %arg2 : i32, i32, i32
  }
  func.func @transform_2(%arg0: i32, %arg1: i32, %arg2: i32) -> (i32, i32, i32) {
    %c0_i32 = arith.constant 0 : i32
    %c0_i32_0 = arith.constant 0 : i32
    return %arg0, %c0_i32, %arg2 : i32, i32, i32
  }
  func.func @transform_3(%arg0: i32, %arg1: i32, %arg2: i32) -> (i32, i32, i32) {
    %c0_i32 = arith.constant 0 : i32
    return %arg0, %arg1, %arg2 : i32, i32, i32
  }
}

</mosaic_0001>

<llo_original>
// kernel: tpu_custom_call.1
$region0: #{tpu_custom_call.1}
  #allocation0 [shape = 'u32[]', space=smem, size = 0x4, offset = 0x4, fixed_abs, tag = 'smem constant byte address 0x4 - core index']
  #allocation1 [shape = 'u32[144,128]{1,0:T(1,128)}', space=vmem, size = 0x12000, scoped, tag = 'internal scratch']
  %s0 = inlined_call_operand.hbm [shape: f32[3,16,128], index: 0, kind: input, shape index: {}]
  %s1 = inlined_call_operand.hbm [shape: f32[3,128,128], index: 1, kind: input, shape index: {}]
  %s2 = inlined_call_operand.vmem [shape: f32[3,1,128], index: 2, kind: input, shape index: {}]
  %s3 = inlined_call_operand.hbm [shape: f32[3,16,128], index: 3, kind: output, shape index: {}]
  %s4 = sld [smem:[#allocation0]]
  $region53: #{tpu_custom_call.1} parent=0
    _
  %s6 = ssub.s32 1, %s4
  %s7 = scalar_select 0, %s6, %s4
  $region1: #{tpu_custom_call.1} parent=0
    #allocation2 [shape = 'u8[16384]{0}', space=vmem, size = 0x4000, scoped, tag = 'input window, operand 0']
    #allocation3 [shape = 's32[2]{0}', space=sflag, size = 0x8, scoped, tag = 'scoped memory for tpu_custom_call.1']
    #allocation4 [shape = 's32[2]{0}', space=sflag, size = 0x8, scoped, tag = 'scoped memory for tpu_custom_call.1']
    #allocation5 [shape = 'u8[131072]{0}', space=vmem, size = 0x20000, scoped, tag = 'input window, operand 1']
    #allocation6 [shape = 's32[2]{0}', space=sflag, size = 0x8, scoped, tag = 'scoped memory for tpu_custom_call.1']
    #allocation7 [shape = 'u8[16384]{0}', space=vmem, size = 0x4000, scoped, tag = 'output window, operand 0']
    %8 = vsyncpa [#allocation3], 0
    %s9 = scalar_lea.sflag [#allocation3], 1
    %10 = vsyncpa %s9, 0
    %11 = vsyncpa [#allocation6], 0
    %s12 = scalar_lea.sflag [#allocation6], 1
    %13 = vsyncpa %s12, 0
    %14 = vsyncpa [#allocation4], 0
    %s15 = scalar_lea.sflag [#allocation4], 1
    %16 = vsyncpa %s15, 0
    loop: start=0, step=1, limit=5
    $region2: #{tpu_custom_call.1} parent=1 // loop_pre_header
      _
    $region3: #{tpu_custom_call.1} parent=1 // loop_header
      %s18 = sphi 0, %s22
      %p19 = scmp.ge.s32.totalorder %s18, 5
      %s25 = sphi 0, %s44
      %s26 = sphi 0, %s40
      %s27 = sphi 0, %s36
      %s28 = sphi 0, %s25
      %s29 = sphi 0, %s26
      %s30 = sphi 0, %s27
      %s31 = sphi 0, %s28
      %s32 = sphi 0, %s29
      %s33 = sphi 0, %s30
      %s49 = sphi 0, %s51
      %s52 = sphi 0, %s49
      %s53 = sphi 0, %s52
      %s69 = sphi 0, %s53
      %s77 = sphi 0, %s79
      %s80 = sphi 0, %s77
      %s81 = sphi 0, %s80
      %s97 = sphi 0, %s81
      %s105 = sphi 0, %s107
      %s108 = sphi 0, %s105
      %s109 = sphi 0, %s108
      %s125 = sphi 0, %s109
      %s135 = sphi 0, %s137
      %s138 = sphi 0, %s135
      %s139 = sphi 0, %s138
      %s155 = sphi 0, %s139
    $region4: #{tpu_custom_call.1} parent=1 // loop_header_branch
      %21 = sbr.rel (%p19) target = $region8
    $region5: #{tpu_custom_call.1} parent=1 // loop_body
      %s23 = ssub.s32 %s18, 1
      %s24 = ssub.s32 %s18, 2
      %s34 = sadd.s32 1, %s27
      %p35 = scmp.ge.s32.totalorder %s34, 1
      %s36 = scalar_select %p35, 0, %s34
      %s37 = sadd.s32 1, %s26
      %s38 = scalar_select %p35, %s37, %s26
      %p39 = scmp.ge.s32.totalorder %s38, 1
      %s40 = scalar_select %p39, 0, %s38
      %s41 = sadd.s32 1, %s25
      %s42 = scalar_select %p39, %s41, %s25
      %p43 = scmp.ge.s32.totalorder %s42, 3
      %s44 = scalar_select %p43, 0, %s42
      %s45 = ssub.s32 %s25, %s44
      %s46 = ssub.s32 %s26, %s40
      %s47 = sor.u32 %s45, %s46
      %p48 = scmp.eq.s32.totalorder %s47, 0
      %s50 = sadd.s32 %s49, 1
      %s51 = scalar_select %p48, %s49, %s50
      %p54 = pneg %p48
      %p55 = scmp.eq.s32.totalorder %s18, 2
      %p56 = por %p54, %p55
      %p57 = scmp.ne.s32.totalorder %s49, %s52
      %p58 = scmp.eq.s32.totalorder %s18, 0
      %p59 = por %p57, %p58
      %p60 = scmp.ne.s32.totalorder %s49, %s52
      %p61 = scmp.eq.s32.totalorder %s23, 2
      %p62 = por %p60, %p61
      %p63 = scmp.ne.s32.totalorder %s52, %s53
      %p64 = scmp.eq.s32.totalorder %s23, 0
      %p65 = por %p63, %p64
      %p66 = scmp.ne.s32.totalorder %s52, %s53
      %p67 = scmp.eq.s32.totalorder %s24, 2
      %p68 = por %p66, %p67
      %p70 = scmp.ne.s32.totalorder %s53, %s69
      %p71 = scmp.eq.s32.totalorder %s24, 0
      %p72 = por %p70, %p71
      %s73 = ssub.s32 %s25, %s44
      %s74 = ssub.s32 %s27, %s36
      %s75 = sor.u32 %s73, %s74
      %p76 = scmp.eq.s32.totalorder %s75, 0
      %s78 = sadd.s32 %s77, 1
      %s79 = scalar_select %p76, %s77, %s78
      %p82 = pneg %p76
      %p83 = scmp.eq.s32.totalorder %s18, 2
      %p84 = por %p82, %p83
      %p85 = scmp.ne.s32.totalorder %s77, %s80
      %p86 = scmp.eq.s32.totalorder %s18, 0
      %p87 = por %p85, %p86
      %p88 = scmp.ne.s32.totalorder %s77, %s80
      %p89 = scmp.eq.s32.totalorder %s23, 2
      %p90 = por %p88, %p89
      %p91 = scmp.ne.s32.totalorder %s80, %s81
      %p92 = scmp.eq.s32.totalorder %s23, 0
      %p93 = por %p91, %p92
      %p94 = scmp.ne.s32.totalorder %s80, %s81
      %p95 = scmp.eq.s32.totalorder %s24, 2
      %p96 = por %p94, %p95
      %p98 = scmp.ne.s32.totalorder %s81, %s97
      %p99 = scmp.eq.s32.totalorder %s24, 0
      %p100 = por %p98, %p99
      %s101 = ssub.s32 %s25, %s44
      %s102 = ssub.s32 %s27, %s36
      %s103 = sor.u32 %s101, %s102
      %p104 = scmp.eq.s32.totalorder %s103, 0
      %s106 = sadd.s32 %s105, 1
      %s107 = scalar_select %p104, %s105, %s106
      %p110 = pneg %p104
      %p111 = scmp.eq.s32.totalorder %s18, 2
      %p112 = por %p110, %p111
      %p113 = scmp.ne.s32.totalorder %s105, %s108
      %p114 = scmp.eq.s32.totalorder %s18, 0
      %p115 = por %p113, %p114
      %p116 = scmp.ne.s32.totalorder %s105, %s108
      %p117 = scmp.eq.s32.totalorder %s23, 2
      %p118 = por %p116, %p117
      %p119 = scmp.ne.s32.totalorder %s108, %s109
      %p120 = scmp.eq.s32.totalorder %s23, 0
      %p121 = por %p119, %p120
      %p122 = scmp.ne.s32.totalorder %s108, %s109
      %p123 = scmp.eq.s32.totalorder %s24, 2
      %p124 = por %p122, %p123
      %p126 = scmp.ne.s32.totalorder %s109, %s125
      %p127 = scmp.eq.s32.totalorder %s24, 0
      %p128 = por %p126, %p127
      %s129 = ssub.s32 %s25, %s44
      %s130 = ssub.s32 %s26, %s40
      %s131 = sor.u32 %s129, %s130
      %s132 = ssub.s32 %s27, %s36
      %s133 = sor.u32 %s131, %s132
      %p134 = scmp.eq.s32.totalorder %s133, 0
      %s136 = sadd.s32 %s135, 1
      %s137 = scalar_select %p134, %s135, %s136
      %p140 = pneg %p134
      %p141 = scmp.eq.s32.totalorder %s18, 2
      %p142 = por %p140, %p141
      %p143 = scmp.ne.s32.totalorder %s135, %s138
      %p144 = scmp.eq.s32.totalorder %s18, 0
      %p145 = por %p143, %p144
      %p146 = scmp.ne.s32.totalorder %s135, %s138
      %p147 = scmp.eq.s32.totalorder %s23, 2
      %p148 = por %p146, %p147
      %p149 = scmp.ne.s32.totalorder %s138, %s139
      %p150 = scmp.eq.s32.totalorder %s23, 0
      %p151 = por %p149, %p150
      %p152 = scmp.ne.s32.totalorder %s138, %s139
      %p153 = scmp.eq.s32.totalorder %s24, 2
      %p154 = por %p152, %p153
      %p156 = scmp.ne.s32.totalorder %s139, %s155
      %p157 = scmp.eq.s32.totalorder %s24, 0
      %p158 = por %p156, %p157
      %p159 = scmp.le.s32.totalorder 1, %s18
      %p160 = scmp.lt.s32.totalorder %s18, 4
      %p161 = pnand %p159, %p160
      %p162 = pneg %p161
      // Predicated region
      $region9: #{tpu_custom_call.1} parent=5 // pred_check
        _
      $region10: #{tpu_custom_call.1} parent=5 // pred_check_branch
        %164 = sbr.rel (%p161) target = $region12
      $region11: #{tpu_custom_call.1} parent=5 // pred_region
        %s165 = ssub.s32 %s18, 1
      $region12: #{tpu_custom_call.1} parent=5 // pred_fallthru
        _
      %p166 = scmp.lt.s32.totalorder %s18, 3
      // Predicated region
      $region13: #{tpu_custom_call.1} parent=5 // pred_check
        %p167 = pneg %p166
      $region14: #{tpu_custom_call.1} parent=5 // pred_check_branch
        %169 = sbr.rel (%p167) target = $region16
      $region15: #{tpu_custom_call.1} parent=5 // pred_region
        // Predicated region
        $region17: #{tpu_custom_call.1} parent=15 // pred_check
          %p170 = pneg %p59
        $region18: #{tpu_custom_call.1} parent=15 // pred_check_branch
          %172 = sbr.rel (%p170) target = $region20
        $region19: #{tpu_custom_call.1} parent=15 // pred_region
          %s173 = sand.u32 %s49, 1
          %s174 = scalar_lea.sflag [#allocation3], %s173
          %s175 = sand.u32 %s49, 1
          %s176 = smul.addr %s175, 16
          %s177 = scalar_lea.vmem [#allocation2], %s176
          %s178 = smul.u32 2, %s26
          %s180 = ssub.s32 256, 256
          %181 = vsyncadd %s174, %s180
          %s182 = smul.addr %s25, 2
          %s183 = sadd.s32 %s178, %s182
          %s184 = smul.addr %s183, 128
          %s185 = scalar_lea.hbm %s0, %s184
          %s186 = sshll.u32 %s177, 4
          %s187 = int_to_ptr.vmem [resolvable:$true] %s186
          %192 = dma.hbm_to_vmem [thread:$0]  %s185, 256, %s187, %s174, 128, 128, 8
        $region20: #{tpu_custom_call.1} parent=15 // pred_fallthru
          _
        // Predicated region
        $region21: #{tpu_custom_call.1} parent=15 // pred_check
          %p193 = pneg %p87
        $region22: #{tpu_custom_call.1} parent=15 // pred_check_branch
          %195 = sbr.rel (%p193) target = $region24
        $region23: #{tpu_custom_call.1} parent=15 // pred_region
          %s196 = sand.u32 %s77, 1
          %s197 = scalar_lea.sflag [#allocation6], %s196
          %s198 = sand.u32 %s77, 1
          %s199 = smul.addr %s198, 128
          %s200 = scalar_lea.vmem [#allocation5], %s199
          %s202 = ssub.s32 2048, 2048
          %203 = vsyncadd %s197, %s202
          %s204 = smul.addr %s25, 16
          %s205 = sadd.s32 %s27, %s204
          %s206 = smul.addr %s205, 128
          %s207 = scalar_lea.hbm %s1, %s206
          %s208 = sshll.u32 %s200, 4
          %s209 = int_to_ptr.vmem [resolvable:$true] %s208
          %214 = dma.hbm_to_vmem [thread:$0]  %s207, 2048, %s209, %s197, 128, 128, 8
        $region24: #{tpu_custom_call.1} parent=15 // pred_fallthru
          _
        // Predicated region
        $region25: #{tpu_custom_call.1} parent=15 // pred_check
          %p215 = pneg %p115
        $region26: #{tpu_custom_call.1} parent=15 // pred_check_branch
          %217 = sbr.rel (%p215) target = $region28
        $region27: #{tpu_custom_call.1} parent=15 // pred_region
          %p218 = scmp.lt.s32.totalorder %s25, 2
          %s219 = scalar_select %p218, %s25, 2
          %p220 = scmp.lt.s32.totalorder %s27, 0
          %s221 = scalar_select %p220, %s27, 0
          %s222 = sadd.s32 %s221, %s219
          %s223 = scalar_lea.vmem %s2, %s222
        $region28: #{tpu_custom_call.1} parent=15 // pred_fallthru
          _
      $region16: #{tpu_custom_call.1} parent=5 // pred_fallthru
        _
      %p224 = scmp.le.s32.totalorder 1, %s18
      %p225 = scmp.lt.s32.totalorder %s18, 4
      %p226 = pnand %p224, %p225
      %p227 = pneg %p226
      // Predicated region
      $region29: #{tpu_custom_call.1} parent=5 // pred_check
        _
      $region30: #{tpu_custom_call.1} parent=5 // pred_check_branch
        %229 = sbr.rel (%p226) target = $region32
      $region31: #{tpu_custom_call.1} parent=5 // pred_region
        %s230 = ssub.s32 %s18, 1
        %s231 = sand.u32 %s52, 1
        %s232 = scalar_lea.sflag [#allocation3], %s231
        %s233 = sand.u32 %s52, 1
        %s234 = smul.addr %s233, 16
        %s235 = scalar_lea.vmem [#allocation2], %s234
        // Predicated region
        $region33: #{tpu_custom_call.1} parent=31 // pred_check
          %p236 = pneg %p65
        $region34: #{tpu_custom_call.1} parent=31 // pred_check_branch
          %238 = sbr.rel (%p236) target = $region36
        $region35: #{tpu_custom_call.1} parent=31 // pred_region
          %239 = dma.done %s232, 256
        $region36: #{tpu_custom_call.1} parent=31 // pred_fallthru
          _
        %s240 = sand.u32 %s80, 1
        %s241 = scalar_lea.sflag [#allocation6], %s240
        %s242 = sand.u32 %s80, 1
        %s243 = smul.addr %s242, 128
        %s244 = scalar_lea.vmem [#allocation5], %s243
        // Predicated region
        $region37: #{tpu_custom_call.1} parent=31 // pred_check
          %p245 = pneg %p93
        $region38: #{tpu_custom_call.1} parent=31 // pred_check_branch
          %247 = sbr.rel (%p245) target = $region40
        $region39: #{tpu_custom_call.1} parent=31 // pred_region
          %248 = dma.done %s241, 2048
        $region40: #{tpu_custom_call.1} parent=31 // pred_fallthru
          _
        %s249 = sand.u32 %s52, 1
        %s250 = scalar_lea.sflag [#allocation3], %s249
        %s251 = sand.u32 %s52, 1
        %s252 = smul.addr %s251, 16
        %s253 = scalar_lea.vmem [#allocation2], %s252
        %p254 = pneg %p65
        %p255 = pneg %p62
        %s256 = sand.u32 %s80, 1
        %s257 = scalar_lea.sflag [#allocation6], %s256
        %s258 = sand.u32 %s80, 1
        %s259 = smul.addr %s258, 128
        %s260 = scalar_lea.vmem [#allocation5], %s259
        %p261 = pneg %p93
        %p262 = pneg %p90
        %p263 = scmp.lt.s32.totalorder %s28, 2
        %s264 = scalar_select %p263, %s28, 2
        %p265 = scmp.lt.s32.totalorder %s30, 0
        %s266 = scalar_select %p265, %s30, 0
        %s267 = sadd.s32 %s266, %s264
        %s268 = scalar_lea.vmem %s2, %s267
        %p269 = pneg %p121
        %p270 = pneg %p118
        %p271 = pneg %p151
        %p272 = pneg %p148
        %s273 = sand.u32 %s138, 1
        %s274 = scalar_lea.sflag [#allocation4], %s273
        %s275 = sand.u32 %s138, 1
        %s276 = smul.addr %s275, 16
        %s277 = scalar_lea.vmem [#allocation7], %s276
        %s278 = smul.u32 2, %s29
        %p279 = scmp.lt.s32.totalorder %s28, 2
        %s280 = scalar_select %p279, %s28, 2
        %p281 = scmp.lt.s32.totalorder %s30, 0
        %s282 = scalar_select %p281, %s30, 0
        %s283 = sadd.s32 %s282, %s280
        %s284 = scalar_lea.vmem %s2, %s283
        %s285 = smul.u32 2, %s29
        %v286 = vld [vmem:[%s235] sm:$0xff]
        %v287 = vld [vmem:[%s235 + $0x8] sm:$0xff]
        %v288 = vld [vmem:[%s244] sm:$0xff]
        %v289 = vld [vmem:[%s244 + $0x8] sm:$0xff]
        %v290 = vld [vmem:[%s244 + $0x10] sm:$0xff]
        %v291 = vld [vmem:[%s244 + $0x18] sm:$0xff]
        %v292 = vld [vmem:[%s244 + $0x20] sm:$0xff]
        %v293 = vld [vmem:[%s244 + $0x28] sm:$0xff]
        %v294 = vld [vmem:[%s244 + $0x30] sm:$0xff]
        %v295 = vld [vmem:[%s244 + $0x38] sm:$0xff]
        %v296 = vld [vmem:[%s244 + $0x40] sm:$0xff]
        %v297 = vld [vmem:[%s244 + $0x48] sm:$0xff]
        %v298 = vld [vmem:[%s244 + $0x50] sm:$0xff]
        %v299 = vld [vmem:[%s244 + $0x58] sm:$0xff]
        %v300 = vld [vmem:[%s244 + $0x60] sm:$0xff]
        %v301 = vld [vmem:[%s244 + $0x68] sm:$0xff]
        %v302 = vld [vmem:[%s244 + $0x70] sm:$0xff]
        %v303 = vld [vmem:[%s244 + $0x78] sm:$0xff]
        %v304 = vld [vmem:[%s284] sm:$0x1]
        %v306 = vlaneseq
        %v307 = vshrl.u32 %v306, 7
        %v308 = vsub.s32 0, %v307
        %v309 = vrot.slane %v304, %v308
        %311 = vmatprep.subr.mxu0 0.0
        %312 = vmatpush1.msra.mxu0 %v303
        %313 = vmatprep.subr.mxu0 0.0
        %314 = vmatpush1.msra.mxu0 %v302
        %315 = vmatprep.subr.mxu0 0.0
        %316 = vmatpush1.msra.mxu0 %v301
        %317 = vmatprep.subr.mxu0 0.0
        %318 = vmatpush1.msra.mxu0 %v300
        %319 = vmatprep.subr.mxu0 0.0
        %320 = vmatpush1.msra.mxu0 %v299
        %321 = vmatprep.subr.mxu0 0.0
        %322 = vmatpush1.msra.mxu0 %v298
        %323 = vmatprep.subr.mxu0 0.0
        %324 = vmatpush1.msra.mxu0 %v297
        %325 = vmatprep.subr.mxu0 0.0
        %326 = vmatpush1.msra.mxu0 %v296
        %327 = vmatprep.subr.mxu0 0.0
        %328 = vmatpush1.msra.mxu0 %v295
        %329 = vmatprep.subr.mxu0 0.0
        %330 = vmatpush1.msra.mxu0 %v294
        %331 = vmatprep.subr.mxu0 0.0
        %332 = vmatpush1.msra.mxu0 %v293
        %333 = vmatprep.subr.mxu0 0.0
        %334 = vmatpush1.msra.mxu0 %v292
        %335 = vmatprep.subr.mxu0 0.0
        %336 = vmatpush1.msra.mxu0 %v291
        %337 = vmatprep.subr.mxu0 0.0
        %338 = vmatpush1.msra.mxu0 %v290
        %339 = vmatprep.subr.mxu0 0.0
        %340 = vmatpush1.msra.mxu0 %v289
        %341 = vmatprep.subr.mxu0 0.0
        %342 = vmatpush1.msra.mxu0 %v288
        %343 = vmatprep.subr.mxu0 0.0
        %344 = vmatpush2.msra.mxu0 0.0
        %345 = vmatprep.subr.mxu0 0.0
        %346 = vmatpush2.msra.mxu0 0.0
        %347 = vmatprep.subr.mxu0 0.0
        %348 = vmatpush2.msra.mxu0 0.0
        %349 = vmatprep.subr.mxu0 0.0
        %350 = vmatpush2.msra.mxu0 0.0
        %351 = vmatprep.subr.mxu0 0.0
        %352 = vmatpush2.msra.mxu0 0.0
        %353 = vmatprep.subr.mxu0 0.0
        %354 = vmatpush2.msra.mxu0 0.0
        %355 = vmatprep.subr.mxu0 0.0
        %356 = vmatpush2.msra.mxu0 0.0
        %357 = vmatprep.subr.mxu0 0.0
        %358 = vmatpush2.msra.mxu0 0.0
        %359 = vmatprep.subr.mxu0 0.0
        %360 = vmatpush2.msra.mxu0 0.0
        %361 = vmatprep.subr.mxu0 0.0
        %362 = vmatpush2.msra.mxu0 0.0
        %363 = vmatprep.subr.mxu0 0.0
        %364 = vmatpush2.msra.mxu0 0.0
        %365 = vmatprep.subr.mxu0 0.0
        %366 = vmatpush2.msra.mxu0 0.0
        %367 = vmatprep.subr.mxu0 0.0
        %368 = vmatpush2.msra.mxu0 0.0
        %369 = vmatprep.subr.mxu0 0.0
        %370 = vmatpush2.msra.mxu0 0.0
        %371 = vmatprep.subr.mxu0 0.0
        %372 = vmatpush2.msra.mxu0 0.0
        %373 = vmatprep.subr.mxu0 0.0
        %374 = vmatpush2.msra.mxu0 0.0
        %375 = vmatprep.mubr.f32.mxu0 0.0
        %376 = vmatmul.mubr.f32.gmra.mxu0 %v286
        %v377 = vpop.f32.mrf.mxu0
        %v378 = vadd.f32 %v309, %v377
        %v379 = vpop.f32.mrf.mxu0
        %380 = vmatprep.mubr.f32.mxu0 0.0
        %381 = vmatmul.mubr.f32.gmra.mxu0 %v287
        %v382 = vpop.f32.mrf.mxu0
        %v383 = vadd.f32 %v309, %v382
        %v384 = vpop.f32.mrf.mxu0
        %385 = vdwg.mxu0
        %386 = vst [vmem:[%s277] sm:$0xff] %v378
        %387 = vst [vmem:[%s277 + $0x8] sm:$0xff] %v383
        %s388 = sand.u32 %s138, 1
        %s389 = scalar_lea.sflag [#allocation4], %s388
        %s390 = sand.u32 %s138, 1
        %s391 = smul.addr %s390, 16
        %s392 = scalar_lea.vmem [#allocation7], %s391
        // Predicated region
        $region41: #{tpu_custom_call.1} parent=31 // pred_check
          %p393 = pneg %p148
        $region42: #{tpu_custom_call.1} parent=31 // pred_check_branch
          %395 = sbr.rel (%p393) target = $region44
        $region43: #{tpu_custom_call.1} parent=31 // pred_region
          %s396 = smul.u32 2, %s29
          %s398 = ssub.s32 256, 256
          %399 = vsyncadd %s389, %s398
          %s400 = sadd.s32 %s30, %s396
          %s401 = smul.addr %s28, 2
          %s402 = sadd.s32 %s400, %s401
          %s403 = smul.addr %s402, 128
          %s404 = scalar_lea.hbm %s3, %s403
          %s405 = sshll.u32 %s392, 4
          %s406 = int_to_ptr.vmem [resolvable:$true] %s405
          %411 = dma.vmem_to_hbm [thread:$0]  %s406, 256, %s404, %s389, 128, 128, 8
        $region44: #{tpu_custom_call.1} parent=31 // pred_fallthru
          _
      $region32: #{tpu_custom_call.1} parent=5 // pred_fallthru
        _
      %p412 = scmp.le.s32.totalorder 2, %s18
      // Predicated region
      $region45: #{tpu_custom_call.1} parent=5 // pred_check
        %p413 = pneg %p412
      $region46: #{tpu_custom_call.1} parent=5 // pred_check_branch
        %415 = sbr.rel (%p413) target = $region48
      $region47: #{tpu_custom_call.1} parent=5 // pred_region
        %s416 = ssub.s32 %s18, 2
        // Predicated region
        $region49: #{tpu_custom_call.1} parent=47 // pred_check
          %p417 = pneg %p154
        $region50: #{tpu_custom_call.1} parent=47 // pred_check_branch
          %419 = sbr.rel (%p417) target = $region52
        $region51: #{tpu_custom_call.1} parent=47 // pred_region
          %s420 = sand.u32 %s139, 1
          %s421 = scalar_lea.sflag [#allocation4], %s420
          %s422 = sand.u32 %s139, 1
          %s423 = smul.addr %s422, 16
          %s424 = scalar_lea.vmem [#allocation7], %s423
          %425 = dma.done %s421, 256
        $region52: #{tpu_custom_call.1} parent=47 // pred_fallthru
          _
      $region48: #{tpu_custom_call.1} parent=5 // pred_fallthru
        _
    $region6: #{tpu_custom_call.1} parent=1 // loop_footer
      %s22 = sadd.s32 1, %s18
    $region7: #{tpu_custom_call.1} parent=1 // loop_footer_branch
      %17 = sbr.rel target = $region3
    $region8: #{tpu_custom_call.1} parent=1 // loop_exit
      _
    %426 = vsyncpa [#allocation3], 1
    %s427 = scalar_lea.sflag [#allocation3], 1
    %428 = vsyncpa %s427, 1
    %429 = vsyncpa [#allocation6], 1
    %s430 = scalar_lea.sflag [#allocation6], 1
    %431 = vsyncpa %s430, 1
    %432 = vsyncpa [#allocation4], 1
    %s433 = scalar_lea.sflag [#allocation4], 1
    %434 = vsyncpa %s433, 1

</llo_original>
